<compile_context>
chip_gen: v7x
topology: tpu7x:2x2x1
jax: 0.10.0
libtpu: 0.0.40
codegen_flags: <defaults>
</compile_context>

<pallas_src>
import functools

import jax
import jax.numpy as jnp
from jax.experimental import pallas as pl
from jax.experimental.pallas import tpu as pltpu


def _round_up(x: int, m: int) -> int:
    return (x + m - 1) // m * m


def _resident_spec(shape):
    """BlockSpec for an operand that stays resident in VMEM across grid steps.

    Single-buffered when the installed Pallas supports pipeline_mode; otherwise
    falls back to the default (double-buffered) spec.
    """
    index_map = lambda i: (0, 0)
    try:
        return pl.BlockSpec(shape, index_map, pipeline_mode=pl.Buffered(1))
    except (AttributeError, TypeError):
        return pl.BlockSpec(shape, index_map)


def _time_embedding_kernel(t_ref, fac_ref, w1_ref, b1_ref, w2_ref, b2_ref,
                           o_ref, emb_ref, *, half, hidden_chunk):
    """Fused sinusoidal embedding -> Linear -> SiLU -> Linear.

    t_ref:   (tb, 1)       f32   timesteps for this batch tile
    fac_ref: (1, half)     f32   10000 ** (k / half)
    w1_ref:  (dim, hidden) bf16  first Linear weight, (in, out) layout
    b1_ref:  (1, hidden)   f32
    w2_ref:  (hidden, dim) bf16  second Linear weight, (in, out) layout
    b2_ref:  (1, dim)      f32
    o_ref:   (tb, dim)
    emb_ref: (tb, dim)     VMEM scratch: [sin | cos] slab in matmul dtype
    """
    hidden = w1_ref.shape[1]

    # Sinusoidal embedding. Writing sin/cos into the two lane-halves of the
    # scratch slab lets layer 1 run as ONE full-K matmul (no lane-concat
    # relayout, no under-filled MXU contraction when half < MXU K width).
    ang = t_ref[...] / fac_ref[...]                          # (tb, half) f32
    emb_ref[:, :half] = jnp.sin(ang).astype(emb_ref.dtype)
    emb_ref[:, half:] = jnp.cos(ang).astype(emb_ref.dtype)

    # Layer 1 + SiLU + layer 2, chunked over the hidden axis so the live
    # (tb, chunk) intermediate stays small; both matmuls accumulate in f32.
    out = None
    for c0 in range(0, hidden, hidden_chunk):
        c1 = c0 + hidden_chunk
        h = (jnp.dot(emb_ref[...], w1_ref[:, c0:c1],
                     preferred_element_type=jnp.float32)
             + b1_ref[:, c0:c1])                             # (tb, chunk) f32
        # SiLU: exp + approx reciprocal both go to the EUP slot.
        h = h * pl.reciprocal(1.0 + jnp.exp(-h), approx=True)
        part = jnp.dot(h.astype(w2_ref.dtype), w2_ref[c0:c1, :],
                       preferred_element_type=jnp.float32)
        out = part if out is None else out + part

    o_ref[...] = (out + b2_ref[...]).astype(o_ref.dtype)


def prepare_time_embedding_params(factor, w1, b1, w2, b2,
                                  param_dtype=jnp.bfloat16):
    """One-time parameter layout/dtype conversion (hoisted off the forward path).

    PyTorch Linear weights are (out, in); the kernel wants (in, out). Weights go
    to bf16 (MXU-native); biases and frequencies stay f32.
    """
    half = factor.shape[0]
    dim = 2 * half
    hidden = w1.shape[0]
    return {
        "fac": factor.astype(jnp.float32).reshape(1, half),
        "w1": jnp.transpose(w1).astype(param_dtype),         # (dim, hidden)
        "b1": b1.astype(jnp.float32).reshape(1, hidden),
        "w2": jnp.transpose(w2).astype(param_dtype),         # (hidden, dim)
        "b2": b2.astype(jnp.float32).reshape(1, dim),
    }


def time_embedding(t, params, *, batch_tile=256, out_dtype=jnp.float32,
                   vmem_limit_bytes=None):
    """TimeEmbedding forward.  t: (B,) timesteps -> (B, dim)."""
    fac, w1, b1, w2, b2 = (params["fac"], params["w1"], params["b1"],
                           params["w2"], params["b2"])
    half = fac.shape[1]
    dim = 2 * half
    hidden = w1.shape[1]
    B = t.shape[0]

    # Sublane-aligned batch tile; prefer >=2 parallel grid steps when the batch
    # is big enough (v7x: 2 TensorCores/chip; steps pipeline on v5e/v6e).
    b8 = _round_up(B, 8)
    tb = min(batch_tile, b8)
    if tb == b8 and b8 >= 16:
        tb = _round_up((b8 + 1) // 2, 8)
    B_pad = _round_up(B, tb)

    t_col = t.astype(jnp.float32).reshape(B, 1)
    if B_pad != B:
        t_col = jnp.pad(t_col, ((0, B_pad - B), (0, 0)))

    # Chunk hidden only in tile-aligned multiples of 2048 (keeps slices aligned).
    hidden_chunk = 2048 if (hidden > 2048 and hidden % 2048 == 0) else hidden

    # VMEM budget: resident weights + double-buffered per-step tensors + headroom.
    if vmem_limit_bytes is None:
        wbytes = w1.size * w1.dtype.itemsize + w2.size * w2.dtype.itemsize
        est = (2 * wbytes
               + 4 * tb * (4 * dim + 4 * hidden_chunk + w1.dtype.itemsize * dim)
               + 8 * 2**20)
        vmem_limit_bytes = int(min(64 * 2**20, max(32 * 2**20, est)))

    kernel = functools.partial(_time_embedding_kernel,
                               half=half, hidden_chunk=hidden_chunk)

    out = pl.pallas_call(
        kernel,
        out_shape=jax.ShapeDtypeStruct((B_pad, dim), out_dtype),
        grid_spec=pltpu.PrefetchScalarGridSpec(
            num_scalar_prefetch=0,
            grid=(B_pad // tb,),
            in_specs=[
                pl.BlockSpec((tb, 1), lambda i: (i, 0)),   # timesteps (tiled)
                _resident_spec((1, half)),                 # frequencies
                _resident_spec((dim, hidden)),             # W1 (in, out)
                _resident_spec((1, hidden)),               # b1
                _resident_spec((hidden, dim)),             # W2 (in, out)
                _resident_spec((1, dim)),                  # b2
            ],
            out_specs=pl.BlockSpec((tb, dim), lambda i: (i, 0)),
            scratch_shapes=[pltpu.VMEM((tb, dim), w1.dtype)],
        ),
        compiler_params=pltpu.CompilerParams(
            dimension_semantics=("parallel",),
            vmem_limit_bytes=vmem_limit_bytes,
        ),
    )(t_col, fac, w1, b1, w2, b2)

    return out[:B]


if __name__ == "__main__":
    key = jax.random.PRNGKey(0)
    kt, k1, k2, k3, k4 = jax.random.split(key, 5)

    B, dim = 8, 32
    hidden = 4 * dim
    half = dim // 2

    # Timesteps + synthetic parameters (same shapes as the PyTorch module).
    t = jax.random.uniform(kt, (B,), minval=0.0, maxval=1000.0, dtype=jnp.float32)
    factor = 10000.0 ** (jnp.arange(0, half, dtype=jnp.float32) / half)
    w1 = jax.random.normal(k1, (hidden, dim), dtype=jnp.float32) * 0.05
    b1 = jax.random.normal(k2, (hidden,), dtype=jnp.float32) * 0.05
    w2 = jax.random.normal(k3, (dim, hidden), dtype=jnp.float32) * 0.05
    b2 = jax.random.normal(k4, (dim,), dtype=jnp.float32) * 0.05

    params = prepare_time_embedding_params(factor, w1, b1, w2, b2)  # one-time init
    out = jax.block_until_ready(time_embedding(t, params))
    assert out.shape == (B, dim)

    # Pure-JAX reference (mirrors the PyTorch forward exactly, all f32).
    ang = t[:, None] / factor[None, :]
    emb = jnp.concatenate([jnp.sin(ang), jnp.cos(ang)], axis=-1)
    h_ref = emb @ w1.T + b1
    h_ref = h_ref * jax.nn.sigmoid(h_ref)
    ref = h_ref @ w2.T + b2

    err = float(jnp.max(jnp.abs(out - ref)))
    # bf16 weights + approx-reciprocal SiLU => ~1e-3-level error at these shapes.
    assert err < 1e-2, err
    print("KERNEL_OK")
</pallas_src>

<mosaic_0001>
module attributes {stable_mosaic.version = 11 : i64} {
  func.func @_time_embedding_kernel(%arg0: i32, %arg1: memref<8x1xf32, #tpu.memory_space<vmem>>, %arg2: memref<1x16xf32, #tpu.memory_space<vmem>>, %arg3: memref<32x128xbf16, #tpu.memory_space<vmem>>, %arg4: memref<1x128xf32, #tpu.memory_space<vmem>>, %arg5: memref<128x32xbf16, #tpu.memory_space<vmem>>, %arg6: memref<1x32xf32, #tpu.memory_space<vmem>>, %arg7: memref<8x32xf32, #tpu.memory_space<vmem>>, %arg8: memref<8x32xbf16, #tpu.memory_space<vmem>>) attributes {dimension_semantics = [#tpu.dimension_semantics<parallel>], iteration_bounds = array<i64: 1>, scalar_prefetch = 0 : i64, scratch_operands = 1 : i64, tpu.core_type = #tpu.core_type<tc>, window_params = [{transform_indices = @transform_0, window_bounds = array<i64: 8, 1>}, {pipeline_mode = #tpu.pipeline_mode<synchronous>, transform_indices = @transform_1, window_bounds = array<i64: 1, 16>}, {pipeline_mode = #tpu.pipeline_mode<synchronous>, transform_indices = @transform_2, window_bounds = array<i64: 32, 128>}, {pipeline_mode = #tpu.pipeline_mode<synchronous>, transform_indices = @transform_3, window_bounds = array<i64: 1, 128>}, {pipeline_mode = #tpu.pipeline_mode<synchronous>, transform_indices = @transform_4, window_bounds = array<i64: 128, 32>}, {pipeline_mode = #tpu.pipeline_mode<synchronous>, transform_indices = @transform_5, window_bounds = array<i64: 1, 32>}, {transform_indices = @transform_6, window_bounds = array<i64: 8, 32>}]} {
    %c0 = arith.constant 0 : index
    %c0_0 = arith.constant 0 : index
    %0 = vector.load %arg1[%c0, %c0_0] : memref<8x1xf32, #tpu.memory_space<vmem>>, vector<8x1xf32>
    %c0_1 = arith.constant 0 : index
    %c0_2 = arith.constant 0 : index
    %1 = vector.load %arg2[%c0_1, %c0_2] : memref<1x16xf32, #tpu.memory_space<vmem>>, vector<1x16xf32>
    %2 = vector.broadcast %0 : vector<8x1xf32> to vector<8x16xf32>
    %3 = vector.broadcast %1 : vector<1x16xf32> to vector<8x16xf32>
    %4 = arith.divf %2, %3 : vector<8x16xf32>
    %5 = math.sin %4 : vector<8x16xf32>
    %6 = arith.truncf %5 : vector<8x16xf32> to vector<8x16xbf16>
    %c0_3 = arith.constant 0 : index
    %c0_4 = arith.constant 0 : index
    %7 = vector.load %arg8[%c0_3, %c0_4] : memref<8x32xbf16, #tpu.memory_space<vmem>>, vector<8x16xbf16>
    tpu.vector_store %arg8[%c0_3, %c0_4], %6 {strides = array<i32>} : memref<8x32xbf16, #tpu.memory_space<vmem>>, vector<8x16xbf16>,
    %8 = math.cos %4 : vector<8x16xf32>
    %9 = arith.truncf %8 : vector<8x16xf32> to vector<8x16xbf16>
    %c0_5 = arith.constant 0 : index
    %c16 = arith.constant 16 : index
    %10 = vector.load %arg8[%c0_5, %c16] : memref<8x32xbf16, #tpu.memory_space<vmem>>, vector<8x16xbf16>
    tpu.vector_store %arg8[%c0_5, %c16], %9 {strides = array<i32>} : memref<8x32xbf16, #tpu.memory_space<vmem>>, vector<8x16xbf16>,
    %c0_6 = arith.constant 0 : index
    %c0_7 = arith.constant 0 : index
    %11 = vector.load %arg8[%c0_6, %c0_7] : memref<8x32xbf16, #tpu.memory_space<vmem>>, vector<8x32xbf16>
    %c0_8 = arith.constant 0 : index
    %c0_9 = arith.constant 0 : index
    %12 = vector.load %arg3[%c0_8, %c0_9] : memref<32x128xbf16, #tpu.memory_space<vmem>>, vector<32x128xbf16>
    %cst = arith.constant dense<0.000000e+00> : vector<8x128xf32>
    %13 = tpu.matmul %11, %12, %cst {dimension_numbers = #tpu.dot_dimension_numbers<[1], [0], [0], [1], [0, 0, 1, 1], [], []>} : vector<8x32xbf16>, vector<32x128xbf16>, vector<8x128xf32> -> vector<8x128xf32>
    %c0_10 = arith.constant 0 : index
    %c0_11 = arith.constant 0 : index
    %14 = vector.load %arg4[%c0_10, %c0_11] : memref<1x128xf32, #tpu.memory_space<vmem>>, vector<1x128xf32>
    %15 = vector.broadcast %14 : vector<1x128xf32> to vector<8x128xf32>
    %16 = arith.addf %13, %15 : vector<8x128xf32>
    %cst_12 = arith.constant 0.000000e+00 : f32
    %17 = vector.broadcast %cst_12 : f32 to vector<8x128xf32>
    %18 = arith.subf %17, %16 : vector<8x128xf32>
    %19 = math.exp %18 : vector<8x128xf32>
    %cst_13 = arith.constant 1.000000e+00 : f32
    %20 = vector.broadcast %cst_13 : f32 to vector<8x128xf32>
    %21 = arith.addf %20, %19 : vector<8x128xf32>
    %22 = tpu.reciprocal %21 {approx = true} : vector<8x128xf32> -> vector<8x128xf32>
    %23 = arith.mulf %16, %22 : vector<8x128xf32>
    %24 = arith.truncf %23 : vector<8x128xf32> to vector<8x128xbf16>
    %c0_14 = arith.constant 0 : index
    %c0_15 = arith.constant 0 : index
    %25 = vector.load %arg5[%c0_14, %c0_15] : memref<128x32xbf16, #tpu.memory_space<vmem>>, vector<128x32xbf16>
    %cst_16 = arith.constant dense<0.000000e+00> : vector<8x32xf32>
    %26 = tpu.matmul %24, %25, %cst_16 {dimension_numbers = #tpu.dot_dimension_numbers<[1], [0], [0], [1], [0, 0, 1, 1], [], []>} : vector<8x128xbf16>, vector<128x32xbf16>, vector<8x32xf32> -> vector<8x32xf32>
    %c0_17 = arith.constant 0 : index
    %c0_18 = arith.constant 0 : index
    %27 = vector.load %arg6[%c0_17, %c0_18] : memref<1x32xf32, #tpu.memory_space<vmem>>, vector<1x32xf32>
    %28 = vector.broadcast %27 : vector<1x32xf32> to vector<8x32xf32>
    %29 = arith.addf %26, %28 : vector<8x32xf32>
    %c0_19 = arith.constant 0 : index
    %c0_20 = arith.constant 0 : index
    %30 = vector.load %arg7[%c0_19, %c0_20] : memref<8x32xf32, #tpu.memory_space<vmem>>, vector<8x32xf32>
    tpu.vector_store %arg7[%c0_19, %c0_20], %29 {strides = array<i32>} : memref<8x32xf32, #tpu.memory_space<vmem>>, vector<8x32xf32>,
    return
  }
  func.func @transform_0(%arg0: i32) -> (i32, i32) {
    %c0_i32 = arith.constant 0 : i32
    %c0_i32_0 = arith.constant 0 : i32
    return %arg0, %c0_i32 : i32, i32
  }
  func.func @transform_1(%arg0: i32) -> (i32, i32) {
    %c0_i32 = arith.constant 0 : i32
    %c0_i32_0 = arith.constant 0 : i32
    %c0_i32_1 = arith.constant 0 : i32
    return %c0_i32, %c0_i32_0 : i32, i32
  }
  func.func @transform_2(%arg0: i32) -> (i32, i32) {
    %c0_i32 = arith.constant 0 : i32
    %c0_i32_0 = arith.constant 0 : i32
    %c0_i32_1 = arith.constant 0 : i32
    return %c0_i32, %c0_i32_0 : i32, i32
  }
  func.func @transform_3(%arg0: i32) -> (i32, i32) {
    %c0_i32 = arith.constant 0 : i32
    %c0_i32_0 = arith.constant 0 : i32
    %c0_i32_1 = arith.constant 0 : i32
    return %c0_i32, %c0_i32_0 : i32, i32
  }
  func.func @transform_4(%arg0: i32) -> (i32, i32) {
    %c0_i32 = arith.constant 0 : i32
    %c0_i32_0 = arith.constant 0 : i32
    %c0_i32_1 = arith.constant 0 : i32
    return %c0_i32, %c0_i32_0 : i32, i32
  }
  func.func @transform_5(%arg0: i32) -> (i32, i32) {
    %c0_i32 = arith.constant 0 : i32
    %c0_i32_0 = arith.constant 0 : i32
    %c0_i32_1 = arith.constant 0 : i32
    return %c0_i32, %c0_i32_0 : i32, i32
  }
  func.func @transform_6(%arg0: i32) -> (i32, i32) {
    %c0_i32 = arith.constant 0 : i32
    %c0_i32_0 = arith.constant 0 : i32
    return %arg0, %c0_i32 : i32, i32
  }
}

</mosaic_0001>

<llo_original>
// kernel: tpu_custom_call.1
$region0: #{tpu_custom_call.1}
  #allocation0 [shape = 'u32[]', space=smem, size = 0x4, offset = 0x4, fixed_abs, tag = 'smem constant byte address 0x4 - core index']
  #allocation1 [shape = 'u32[144,128]{1,0:T(1,128)}', space=vmem, size = 0x12000, scoped, tag = 'internal scratch']
  #allocation2 [shape = 'bf16[8,32]{1,0:T(8,128)(2,1)}', space=vmem, size = 0x800, scoped, tag = 'scratch operand']
  %s0 = inlined_call_operand.vmem [shape: f32[8,1], index: 0, kind: input, shape index: {}]
  %s1 = inlined_call_operand.vmem [shape: f32[1,16], index: 1, kind: input, shape index: {}]
  %s2 = inlined_call_operand.vmem [shape: bf16[32,128], index: 2, kind: input, shape index: {}]
  %s3 = inlined_call_operand.vmem [shape: f32[1,128], index: 3, kind: input, shape index: {}]
  %s4 = inlined_call_operand.vmem [shape: bf16[128,32], index: 4, kind: input, shape index: {}]
  %s5 = inlined_call_operand.vmem [shape: f32[1,32], index: 5, kind: input, shape index: {}]
  %s6 = inlined_call_operand.hbm [shape: f32[8,32], index: 6, kind: output, shape index: {}]
  %s7 = sld [smem:[#allocation0]]
  $region34: #{tpu_custom_call.1} parent=0
    _
  %s9 = ssub.s32 1, %s7
  %s10 = scalar_select 0, %s9, %s7
  $region1: #{tpu_custom_call.1} parent=0
    #allocation3 [shape = 'u8[4096]{0}', space=vmem, size = 0x1000, scoped, tag = 'output window, operand 0, single buffered']
    #allocation4 [shape = 's32[1]{0}', space=sflag, size = 0x4, scoped, tag = 'scoped memory for tpu_custom_call.1']
    %11 = vsyncpa [#allocation4], 0
    // Predicated region
    $region2: #{tpu_custom_call.1} parent=1 // pred_check
      _
    $region3: #{tpu_custom_call.1} parent=1 // pred_check_branch
      %13 = sbr.rel (0) target = $region5
    $region4: #{tpu_custom_call.1} parent=1 // pred_region
      _
    $region5: #{tpu_custom_call.1} parent=1 // pred_fallthru
      _
    // Predicated region
    $region6: #{tpu_custom_call.1} parent=1 // pred_check
      _
    $region7: #{tpu_custom_call.1} parent=1 // pred_check_branch
      %15 = sbr.rel (0) target = $region9
    $region8: #{tpu_custom_call.1} parent=1 // pred_region
      _
    $region9: #{tpu_custom_call.1} parent=1 // pred_fallthru
      _
    // Predicated region
    $region10: #{tpu_custom_call.1} parent=1 // pred_check
      _
    $region11: #{tpu_custom_call.1} parent=1 // pred_check_branch
      %17 = sbr.rel (0) target = $region13
    $region12: #{tpu_custom_call.1} parent=1 // pred_region
      _
    $region13: #{tpu_custom_call.1} parent=1 // pred_fallthru
      _
    // Predicated region
    $region14: #{tpu_custom_call.1} parent=1 // pred_check
      _
    $region15: #{tpu_custom_call.1} parent=1 // pred_check_branch
      %19 = sbr.rel (0) target = $region17
    $region16: #{tpu_custom_call.1} parent=1 // pred_region
      _
    $region17: #{tpu_custom_call.1} parent=1 // pred_fallthru
      _
    // Predicated region
    $region18: #{tpu_custom_call.1} parent=1 // pred_check
      _
    $region19: #{tpu_custom_call.1} parent=1 // pred_check_branch
      %21 = sbr.rel (0) target = $region21
    $region20: #{tpu_custom_call.1} parent=1 // pred_region
      _
    $region21: #{tpu_custom_call.1} parent=1 // pred_fallthru
      _
    // Predicated region
    $region22: #{tpu_custom_call.1} parent=1 // pred_check
      _
    $region23: #{tpu_custom_call.1} parent=1 // pred_check_branch
      %23 = sbr.rel (0) target = $region25
    $region24: #{tpu_custom_call.1} parent=1 // pred_region
      _
    $region25: #{tpu_custom_call.1} parent=1 // pred_fallthru
      _
    %v25 = vld [vmem:[%s0] sm:$0xff]
    %v26 = vld [vmem:[%s1] sm:$0x1]
    %28 = vset.pattern.permute.xlu0 0
    %29 = vperm.xlu0 %28, %v25
    %v30 = vpop.permute.xlu0 %29
    %v33 = vlaneseq
    %v34 = vshrl.u32 %v33, 7
    %v35 = vsub.s32 0, %v34
    %v36 = vrot.slane %v26, %v35
    %v38 = vrcp.pop %v36
    %v39 = vmul.f32 %v30, %v38
    %v40 = vand.u32 2147483647, %v39
    %vm41 = vcmp.le.f32.partialorder %v40, 0.7853982
    %vm42 = vcmp.lt.s32.totalorder %v39, 0
    %v43 = vand.u32 %v39, 2139095040
    %v44 = vshrl.u32 %v43, 23
    %v45 = vsub.s32 %v44, 127
    %v46 = vand.u32 2147483647, %v39
    %v47 = vand.u32 %v46, 8388607
    %v48 = vor.u32 %v47, 8388608
    %v49 = vsub.s32 0, %v48
    %v50 = vadd.s32 %v45, 1
    %vm51 = vcmp.gt.s32.totalorder %v50, 0
    %v52 = vsel %vm51, %v50, 0
    %v53 = vshrl.u32 %v52, 5
    %v54 = vand.u32 %v52, 31
    %v55 = vsub.s32 32, %v54
    %v56 = vshrl.u32 683565275, %v55
    %v57 = vshll.u32 683565275, %v54
    %v58 = vshrl.u32 2475754826, %v55
    %v59 = vor.u32 %v57, %v58
    %v60 = vshll.u32 2475754826, %v54
    %v61 = vshrl.u32 2131351028, %v55
    %v62 = vor.u32 %v60, %v61
    %v63 = vshll.u32 2131351028, %v54
    %v64 = vshrl.u32 2102212464, %v55
    %v65 = vor.u32 %v63, %v64
    %v66 = vshll.u32 2102212464, %v54
    %v67 = vshrl.u32 920167782, %v55
    %v68 = vor.u32 %v66, %v67
    %v69 = vshll.u32 920167782, %v54
    %v70 = vshrl.u32 1326507024, %v55
    %v71 = vor.u32 %v69, %v70
    %vm72 = vcmp.lt.s32.totalorder %v53, 1
    %vm73 = vcmp.lt.s32.totalorder %v53, 2
    %vm74 = vcmp.lt.s32.totalorder %v53, 3
    %vm75 = vcmp.lt.s32.totalorder %v53, 4
    %v76 = vsel %vm72, %v56, %v59
    %v77 = vsel %vm75, %v65, 2102212464
    %v78 = vsel %vm74, %v62, %v77
    %v79 = vsel %vm73, %v76, %v78
    %v80 = vsel %vm72, %v59, %v62
    %v81 = vsel %vm75, %v68, 920167782
    %v82 = vsel %vm74, %v65, %v81
    %v83 = vsel %vm73, %v80, %v82
    %v84 = vsel %vm72, %v62, %v65
    %v85 = vsel %vm75, %v71, 1326507024
    %v86 = vsel %vm74, %v68, %v85
    %v87 = vsel %vm73, %v84, %v86
    %v88 = vshll.u32 %v48, 8
    %v89 = vmul.u32.u64.compose %v88, %v87
    %v90 = vextract.low.u32 %v89
    %v91 = vextract.high.u32 %v89
    %v92 = vmul.u32.u64.compose %v88, %v83
    %v93 = vextract.low.u32 %v92
    %v94 = vextract.high.u32 %v92
    %v95 = vmul.u32 %v88, %v79
    %v96 = vadd.s32 %v91, %v93
    %vm97 = vc.u32 %v91, %v93
    %v98 = vadd.s32 %v94, 1
    %v99 = vsel %vm97, %v98, %v94
    %v100 = vadd.s32 %v95, %v99
    %v101 = vadd.s32 %v100, 536870912
    %v102 = vshrl.u32 %v101, 30
    %v103 = vshll.u32 %v102, 30
    %v104 = vsub.s32 %v100, %v103
    %vm105 = vcmp.lt.s32.totalorder %v104, 0
    %v106 = vsub.s32 0, %v104
    %v107 = vsel %vm105, %v106, %v104
    %v108 = vclz %v107
    %v109 = vsub.s32 %v108, 2
    %vm110 = vcmp.gt.s32.totalorder 0, %v109
    %v111 = vsel %vm110, 0, %v109
    %v112 = vsub.s32 32, %v111
    %v113 = vshll.u32 %v104, %v111
    %v114 = vshrl.u32 %v96, %v112
    %v115 = vor.u32 %v113, %v114
    %v116 = vsub.s32 4294967266, %v111
    %v117 = vadd.s32 %v116, 127
    %v118 = vshll.u32 %v117, 23
    %v119 = vor.u32 4788187, %v118
    %v120 = vand.u32 2147483647, %v119
    %v122 = vcvt.s32.f32 %v115
    %v123 = vmul.f32 %v122, %v120
    %v124 = vxor.u32 %v123, 2147483648
    %v125 = vsel %vm42, %v124, %v123
    %v126 = vsub.s32 4, %v102
    %v127 = vsel %vm42, %v126, %v102
    %v128 = vsel %vm41, %v39, %v125
    %v129 = vsel %vm41, 0, %v127
    %v130 = vcosq.f32.pop %v128
    %v131 = vsinq.f32.pop %v128
    %vm132 = vweird.f32 %v39
    %v133 = vadd.s32 %v129, 3
    %v134 = vand.u32 %v133, 3
    %vm135 = vcmp.lt.s32.totalorder %v134, 2
    %vm136 = vcmp.eq.s32.totalorder %v134, 0
    %v137 = vxor.u32 %v131, 2147483648
    %v138 = vsel %vm136, %v130, %v137
    %vm139 = vcmp.eq.s32.totalorder %v134, 2
    %v140 = vxor.u32 %v130, 2147483648
    %v141 = vsel %vm139, %v140, %v131
    %v142 = vsel %vm135, %v138, %v141
    %v143 = vsel %vm132, nan, %v142
    %v144 = vpack.c.bf16 %v143, %v143
    %vm145 = vcmask 125952
    %146 = vst.msk [vmem:[#allocation2] sm:$0xf] %vm145, %v144
    %v147 = vand.u32 2147483647, %v39
    %vm148 = vcmp.le.f32.partialorder %v147, 0.7853982
    %vm149 = vcmp.lt.s32.totalorder %v39, 0
    %v150 = vand.u32 %v39, 2139095040
    %v151 = vshrl.u32 %v150, 23
    %v152 = vsub.s32 %v151, 127
    %v153 = vand.u32 2147483647, %v39
    %v154 = vand.u32 %v153, 8388607
    %v155 = vor.u32 %v154, 8388608
    %v156 = vsub.s32 0, %v155
    %v157 = vadd.s32 %v152, 1
    %vm158 = vcmp.gt.s32.totalorder %v157, 0
    %v159 = vsel %vm158, %v157, 0
    %v160 = vshrl.u32 %v159, 5
    %v161 = vand.u32 %v159, 31
    %v162 = vsub.s32 32, %v161
    %v163 = vshrl.u32 683565275, %v162
    %v164 = vshll.u32 683565275, %v161
    %v165 = vshrl.u32 2475754826, %v162
    %v166 = vor.u32 %v164, %v165
    %v167 = vshll.u32 2475754826, %v161
    %v168 = vshrl.u32 2131351028, %v162
    %v169 = vor.u32 %v167, %v168
    %v170 = vshll.u32 2131351028, %v161
    %v171 = vshrl.u32 2102212464, %v162
    %v172 = vor.u32 %v170, %v171
    %v173 = vshll.u32 2102212464, %v161
    %v174 = vshrl.u32 920167782, %v162
    %v175 = vor.u32 %v173, %v174
    %v176 = vshll.u32 920167782, %v161
    %v177 = vshrl.u32 1326507024, %v162
    %v178 = vor.u32 %v176, %v177
    %vm179 = vcmp.lt.s32.totalorder %v160, 1
    %vm180 = vcmp.lt.s32.totalorder %v160, 2
    %vm181 = vcmp.lt.s32.totalorder %v160, 3
    %vm182 = vcmp.lt.s32.totalorder %v160, 4
    %v183 = vsel %vm179, %v163, %v166
    %v184 = vsel %vm182, %v172, 2102212464
    %v185 = vsel %vm181, %v169, %v184
    %v186 = vsel %vm180, %v183, %v185
    %v187 = vsel %vm179, %v166, %v169
    %v188 = vsel %vm182, %v175, 920167782
    %v189 = vsel %vm181, %v172, %v188
    %v190 = vsel %vm180, %v187, %v189
    %v191 = vsel %vm179, %v169, %v172
    %v192 = vsel %vm182, %v178, 1326507024
    %v193 = vsel %vm181, %v175, %v192
    %v194 = vsel %vm180, %v191, %v193
    %v195 = vshll.u32 %v155, 8
    %v196 = vmul.u32.u64.compose %v195, %v194
    %v197 = vextract.low.u32 %v196
    %v198 = vextract.high.u32 %v196
    %v199 = vmul.u32.u64.compose %v195, %v190
    %v200 = vextract.low.u32 %v199
    %v201 = vextract.high.u32 %v199
    %v202 = vmul.u32 %v195, %v186
    %v203 = vadd.s32 %v198, %v200
    %vm204 = vc.u32 %v198, %v200
    %v205 = vadd.s32 %v201, 1
    %v206 = vsel %vm204, %v205, %v201
    %v207 = vadd.s32 %v202, %v206
    %v208 = vadd.s32 %v207, 536870912
    %v209 = vshrl.u32 %v208, 30
    %v210 = vshll.u32 %v209, 30
    %v211 = vsub.s32 %v207, %v210
    %vm212 = vcmp.lt.s32.totalorder %v211, 0
    %v213 = vsub.s32 0, %v211
    %v214 = vsel %vm212, %v213, %v211
    %v215 = vclz %v214
    %v216 = vsub.s32 %v215, 2
    %vm217 = vcmp.gt.s32.totalorder 0, %v216
    %v218 = vsel %vm217, 0, %v216
    %v219 = vsub.s32 32, %v218
    %v220 = vshll.u32 %v211, %v218
    %v221 = vshrl.u32 %v203, %v219
    %v222 = vor.u32 %v220, %v221
    %v223 = vsub.s32 4294967266, %v218
    %v224 = vadd.s32 %v223, 127
    %v225 = vshll.u32 %v224, 23
    %v226 = vor.u32 4788187, %v225
    %v227 = vand.u32 2147483647, %v226
    %v229 = vcvt.s32.f32 %v222
    %v230 = vmul.f32 %v229, %v227
    %v231 = vxor.u32 %v230, 2147483648
    %v232 = vsel %vm149, %v231, %v230
    %v233 = vsub.s32 4, %v209
    %v234 = vsel %vm149, %v233, %v209
    %v235 = vsel %vm148, %v39, %v232
    %v236 = vsel %vm148, 0, %v234
    %v237 = vcosq.f32.pop %v235
    %v238 = vsinq.f32.pop %v235
    %vm239 = vweird.f32 %v39
    %v240 = vand.u32 %v236, 3
    %vm241 = vcmp.lt.s32.totalorder %v240, 2
    %vm242 = vcmp.eq.s32.totalorder %v240, 0
    %v243 = vxor.u32 %v238, 2147483648
    %v244 = vsel %vm242, %v237, %v243
    %vm245 = vcmp.eq.s32.totalorder %v240, 2
    %v246 = vxor.u32 %v237, 2147483648
    %v247 = vsel %vm245, %v246, %v238
    %v248 = vsel %vm241, %v244, %v247
    %v249 = vsel %vm239, nan, %v248
    %v250 = vpack.c.bf16 %v249, %v249
    %v252 = vunpack.c.l.b16 %v250
    %v253 = vpack.c.b16 %v252, %v252
    %254 = vrot.lane.b32.xlu0 %v253, 16
    %v255 = vpop.permute.xlu0 %254
    %vm257 = vcmask 257152
    %258 = vst.msk [vmem:[#allocation2] sm:$0xf] %vm257, %v255
    %v259 = vld [vmem:[#allocation2] sm:$0xf]
    %v260 = vld [vmem:[%s2] sm:$0xf]
    %v261 = vld [vmem:[%s2 + $0x4] sm:$0xf]
    %v262 = vld [vmem:[%s2 + $0x8] sm:$0xf]
    %v263 = vld [vmem:[%s2 + $0xc] sm:$0xf]
    %v264 = vld [vmem:[%s3] sm:$0x1]
    %v266 = vlaneseq
    %v267 = vshrl.u32 %v266, 7
    %v268 = vsub.s32 0, %v267
    %v269 = vrot.slane %v264, %v268
    %v275 = vunpack.c.l.b16 %v260
    %v276 = vunpack.c.l.b16 %v261
    %v277 = vunpack.c.l.b16 %v262
    %v278 = vunpack.c.l.b16 %v263
    %v279 = vpack.c.b16 %v276, %v275
    %v280 = vpack.c.b16 %v278, %v277
    %vm283 = vcmask 261120
    %v285 = vsel %vm283, %v259, 0
    %287 = vmatprep.subr.bf16.mxu0 0
    %288 = vmatpush1.bf16.msra.mxu0 %v279
    %289 = vmatprep.subr.bf16.mxu0 0
    %290 = vmatpush1.bf16.msra.mxu0 %v280
    %291 = vmatprep.subr.bf16.mxu0 0
    %292 = vmatpush1.bf16.msra.mxu0 0
    %293 = vmatprep.subr.bf16.mxu0 0
    %294 = vmatpush1.bf16.msra.mxu0 0
    %295 = vmatprep.subr.bf16.mxu0 0
    %296 = vmatpush1.bf16.msra.mxu0 0
    %297 = vmatprep.subr.bf16.mxu0 0
    %298 = vmatpush1.bf16.msra.mxu0 0
    %299 = vmatprep.subr.bf16.mxu0 0
    %300 = vmatpush1.bf16.msra.mxu0 0
    %301 = vmatprep.subr.bf16.mxu0 0
    %302 = vmatpush1.bf16.msra.mxu0 0
    %303 = vmatprep.subr.bf16.mxu0 0
    %304 = vmatpush1.bf16.msra.mxu0 0
    %305 = vmatprep.subr.bf16.mxu0 0
    %306 = vmatpush1.bf16.msra.mxu0 0
    %307 = vmatprep.subr.bf16.mxu0 0
    %308 = vmatpush1.bf16.msra.mxu0 0
    %309 = vmatprep.subr.bf16.mxu0 0
    %310 = vmatpush1.bf16.msra.mxu0 0
    %311 = vmatprep.subr.bf16.mxu0 0
    %312 = vmatpush1.bf16.msra.mxu0 0
    %313 = vmatprep.subr.bf16.mxu0 0
    %314 = vmatpush1.bf16.msra.mxu0 0
    %315 = vmatprep.subr.bf16.mxu0 0
    %316 = vmatpush1.bf16.msra.mxu0 0
    %317 = vmatprep.subr.bf16.mxu0 0
    %318 = vmatpush1.bf16.msra.mxu0 0
    %319 = vmatprep.mubr.bf16.mxu0 0
    %320 = vmatmul.mubr.bf16.gmra.mrb[0].mxu0 %v285
    %v321 = vpop.f32.mrb[0].mxu0
    %v322 = vadd.f32 %v269, %v321
    %v323 = vpop.f32.mrb[0].mxu0
    %v324 = vpop.f32.mrb[0].mxu0
    %v325 = vpop.f32.mrb[0].mxu0
    %326 = vdwg.mxu0
    %v327 = vsub.f32 0.0, %v322
    %v328 = vmul.f32 %v327, 1.442695
    %v329 = vpow.pop %v328
    %v330 = vadd.f32 %v329, 1.0
    %v331 = vrcp.pop %v330
    %v332 = vmul.f32 %v322, %v331
    %v333 = vpack.c.bf16 %v332, %v332
    %v334 = vld [vmem:[%s4] sm:$0xf]
    %v335 = vld [vmem:[%s4 + $0x4] sm:$0xf]
    %v336 = vld [vmem:[%s4 + $0x8] sm:$0xf]
    %v337 = vld [vmem:[%s4 + $0xc] sm:$0xf]
    %v338 = vld [vmem:[%s4 + $0x10] sm:$0xf]
    %v339 = vld [vmem:[%s4 + $0x14] sm:$0xf]
    %v340 = vld [vmem:[%s4 + $0x18] sm:$0xf]
    %v341 = vld [vmem:[%s4 + $0x1c] sm:$0xf]
    %v342 = vld [vmem:[%s4 + $0x20] sm:$0xf]
    %v343 = vld [vmem:[%s4 + $0x24] sm:$0xf]
    %v344 = vld [vmem:[%s4 + $0x28] sm:$0xf]
    %v345 = vld [vmem:[%s4 + $0x2c] sm:$0xf]
    %v346 = vld [vmem:[%s4 + $0x30] sm:$0xf]
    %v347 = vld [vmem:[%s4 + $0x34] sm:$0xf]
    %v348 = vld [vmem:[%s4 + $0x38] sm:$0xf]
    %v349 = vld [vmem:[%s4 + $0x3c] sm:$0xf]
    %v350 = vld [vmem:[%s5] sm:$0x1]
    %v352 = vlaneseq
    %v353 = vshrl.u32 %v352, 7
    %v354 = vsub.s32 0, %v353
    %v355 = vrot.slane %v350, %v354
    %v373 = vunpack.c.l.b16 %v334
    %v374 = vunpack.c.l.b16 %v335
    %v375 = vunpack.c.l.b16 %v336
    %v376 = vunpack.c.l.b16 %v337
    %v377 = vunpack.c.l.b16 %v338
    %v378 = vunpack.c.l.b16 %v339
    %v379 = vunpack.c.l.b16 %v340
    %v380 = vunpack.c.l.b16 %v341
    %v381 = vunpack.c.l.b16 %v342
    %v382 = vunpack.c.l.b16 %v343
    %v383 = vunpack.c.l.b16 %v344
    %v384 = vunpack.c.l.b16 %v345
    %v385 = vunpack.c.l.b16 %v346
    %v386 = vunpack.c.l.b16 %v347
    %v387 = vunpack.c.l.b16 %v348
    %v388 = vunpack.c.l.b16 %v349
    %v389 = vpack.c.b16 %v374, %v373
    %v390 = vpack.c.b16 %v376, %v375
    %v391 = vpack.c.b16 %v378, %v377
    %v392 = vpack.c.b16 %v380, %v379
    %v393 = vpack.c.b16 %v382, %v381
    %v394 = vpack.c.b16 %v384, %v383
    %v395 = vpack.c.b16 %v386, %v385
    %v396 = vpack.c.b16 %v388, %v387
    %405 = vmatprep.subr.bf16.mxu0 0
    %406 = vmatpush1.bf16.msra.mxu0 %v389
    %407 = vmatprep.subr.bf16.mxu0 0
    %408 = vmatpush1.bf16.msra.mxu0 %v390
    %409 = vmatprep.subr.bf16.mxu0 0
    %410 = vmatpush1.bf16.msra.mxu0 %v391
    %411 = vmatprep.subr.bf16.mxu0 0
    %412 = vmatpush1.bf16.msra.mxu0 %v392
    %413 = vmatprep.subr.bf16.mxu0 0
    %414 = vmatpush1.bf16.msra.mxu0 %v393
    %415 = vmatprep.subr.bf16.mxu0 0
    %416 = vmatpush1.bf16.msra.mxu0 %v394
    %417 = vmatprep.subr.bf16.mxu0 0
    %418 = vmatpush1.bf16.msra.mxu0 %v395
    %419 = vmatprep.subr.bf16.mxu0 0
    %420 = vmatpush1.bf16.msra.mxu0 %v396
    %421 = vmatprep.subr.bf16.mxu0 0
    %422 = vmatpush1.bf16.msra.mxu0 0
    %423 = vmatprep.subr.bf16.mxu0 0
    %424 = vmatpush1.bf16.msra.mxu0 0
    %425 = vmatprep.subr.bf16.mxu0 0
    %426 = vmatpush1.bf16.msra.mxu0 0
    %427 = vmatprep.subr.bf16.mxu0 0
    %428 = vmatpush1.bf16.msra.mxu0 0
    %429 = vmatprep.subr.bf16.mxu0 0
    %430 = vmatpush1.bf16.msra.mxu0 0
    %431 = vmatprep.subr.bf16.mxu0 0
    %432 = vmatpush1.bf16.msra.mxu0 0
    %433 = vmatprep.subr.bf16.mxu0 0
    %434 = vmatpush1.bf16.msra.mxu0 0
    %435 = vmatprep.subr.bf16.mxu0 0
    %436 = vmatpush1.bf16.msra.mxu0 0
    %437 = vmatprep.mubr.bf16.mxu0 0
    %438 = vmatmul.mubr.bf16.gmra.mrb[0].mxu0 %v333
    %v439 = vpop.f32.mrb[0].mxu0
    %v440 = vadd.f32 %v355, %v439
    %v441 = vpop.f32.mrb[0].mxu0
    %v442 = vpop.f32.mrb[0].mxu0
    %v443 = vpop.f32.mrb[0].mxu0
    %444 = vdwg.mxu0
    %445 = vst.msk [vmem:[#allocation3] sm:$0xff] %vm283, %v440
    // Predicated region
    $region26: #{tpu_custom_call.1} parent=1 // pred_check
      _
    $region27: #{tpu_custom_call.1} parent=1 // pred_check_branch
      %447 = sbr.rel (0) target = $region29
    $region28: #{tpu_custom_call.1} parent=1 // pred_region
      %s449 = ssub.s32 128, 128
      %450 = vsyncadd [#allocation4], %s449
      %s452 = sshll.u32 [#allocation3], 4
      %s453 = int_to_ptr.vmem [resolvable:$true] %s452
      %455 = dma.vmem_to_hbm [thread:$0]  %s453, 128, %s6, [#allocation4]
    $region29: #{tpu_custom_call.1} parent=1 // pred_fallthru
      _
    // Predicated region
    $region30: #{tpu_custom_call.1} parent=1 // pred_check
      _
    $region31: #{tpu_custom_call.1} parent=1 // pred_check_branch
      %457 = sbr.rel (0) target = $region33
    $region32: #{tpu_custom_call.1} parent=1 // pred_region
      %458 = dma.done [#allocation4], 128
    $region33: #{tpu_custom_call.1} parent=1 // pred_fallthru
      _
    %459 = vsyncpa [#allocation4], 1

</llo_original>
